<compile_context>
chip_gen: v7x
topology: tpu7x:2x2x1
jax: 0.10.0
libtpu: 0.0.40
codegen_flags: <defaults>
</compile_context>

<pallas_src>
import functools

import jax
import jax.numpy as jnp
from jax import lax
from jax.experimental import pallas as pl
from jax.experimental.pallas import tpu as pltpu


def _round_up(a, b):
    return (a + b - 1) // b * b


def _cdiv(a, b):
    return (a + b - 1) // b


def _fit_tile(dim, max_tile, align):
    """Tile that never (meaningfully) exceeds max_tile, is `align`-aligned, and
    minimizes padding by spreading `dim` evenly across the grid steps."""
    steps = max(1, _cdiv(dim, max_tile))
    return _round_up(_cdiv(dim, steps), align)


def _vmem_capacity_bytes():
    try:
        return int(pltpu.get_tpu_info().vmem_capacity_bytes)
    except Exception:
        return 128 * 2**20  # v5e / v6e default


# ---------------------------------------------------------------------------
# Kernels
# ---------------------------------------------------------------------------
def _full_k_kernel(x_ref, w_ref, b_ref, o_ref, *, dn):
    """Full-K variant: grid = (I, J) (or (J, I)); one MXU contraction per tile."""
    acc = lax.dot_general(
        x_ref[...], w_ref[...],
        dimension_numbers=dn,
        preferred_element_type=jnp.float32,
    )
    o_ref[...] = (acc + b_ref[...].astype(jnp.float32)).astype(o_ref.dtype)


def _k_tiled_kernel_out_acc(x_ref, w_ref, b_ref, o_ref, *, dn):
    """K-tiled, f32 output: accumulate straight into the k-resident output block
    (no scratch accumulator, no finalize pass)."""
    @pl.when(pl.program_id(2) == 0)
    def _():
        o_ref[...] = jnp.broadcast_to(b_ref[...], o_ref.shape).astype(o_ref.dtype)

    o_ref[...] += lax.dot_general(
        x_ref[...], w_ref[...],
        dimension_numbers=dn,
        preferred_element_type=jnp.float32,
    )


def _k_tiled_kernel_scratch(x_ref, w_ref, b_ref, o_ref, acc_ref, *, dn):
    """K-tiled, sub-32-bit output: resident f32 scratch accumulator."""
    @pl.when(pl.program_id(2) == 0)
    def _():
        acc_ref[...] = jnp.zeros_like(acc_ref)

    acc_ref[...] += lax.dot_general(
        x_ref[...], w_ref[...],
        dimension_numbers=dn,
        preferred_element_type=jnp.float32,
    )

    @pl.when(pl.program_id(2) == pl.num_programs(2) - 1)
    def _():
        o_ref[...] = (acc_ref[...] + b_ref[...].astype(jnp.float32)).astype(o_ref.dtype)


# ---------------------------------------------------------------------------
# Wrapper
# ---------------------------------------------------------------------------
def meta_linear(x, weight, bias, *,
                tm_max=512, tn_max=512, tk_max=1024,
                compute_dtype=None,
                vmem_budget_bytes=None,
                force_k_tiled=False):
    """y = x @ weight.T + bias  (PyTorch F.linear semantics).

    x:      (..., in_features)
    weight: (out_features, in_features)   -- native PyTorch layout
    bias:   (out_features,)
    compute_dtype: optional (e.g. jnp.bfloat16) -- cast x/W once in the wrapper,
                   accumulate in f32, output keeps x.dtype.
    """
    orig_shape = x.shape
    K = orig_shape[-1]
    x2 = x.reshape(-1, K)
    M = x2.shape[0]
    N, K2 = weight.shape
    assert K == K2, "in_features mismatch"

    out_dtype = x.dtype
    cdt = jnp.dtype(compute_dtype) if compute_dtype is not None else jnp.dtype(x.dtype)
    cisz = cdt.itemsize
    oisz = jnp.dtype(out_dtype).itemsize
    bisz = jnp.dtype(bias.dtype).itemsize
    sublane = {4: 8, 2: 16, 1: 32}.get(cisz, 8)

    # ---- tile sizes (ragged-friendly: spread dim evenly over grid steps) ----
    tm = _fit_tile(M, tm_max, sublane)
    tn = _fit_tile(N, tn_max, 128)
    Mp, Np = _round_up(M, tm), _round_up(N, tn)
    In, Jn = Mp // tm, Np // tn

    # v7x has 2 TensorCores: give a parallel axis >=2 steps when it is free
    # (padding-neutral split only; costs one ~0.35us grid step elsewhere).
    if In == 1 and Jn == 1 and tn >= 256 and tn % 256 == 0:
        tn //= 2
        Jn = Np // tn

    Kp = _round_up(K, 128)

    # ---- generation-aware VMEM budget / limit ----
    cap = _vmem_capacity_bytes()
    big_part = cap >= 100 * 2**20              # 128 MiB (v5e/v6e) vs 64 MiB (v7x)
    if vmem_budget_bytes is None:
        vmem_budget_bytes = (88 if big_part else 26) * 2**20
    limit_cap = (100 if big_part else 46) * 2**20

    # Small row tiles make an in-kernel transpose of the (N,K) weight tile a real
    # fraction of the MXU work (vxpose and vmatmul share the extended slots), so
    # pre-transpose W once in the wrapper there; keep native layout otherwise.
    pretranspose_w = tm < 128
    dn = ((((1,), (0,)), ((), ())) if pretranspose_w
          else (((1,), (1,)), ((), ())))

    # Double-buffered footprint of the full-K path (incl. transient f32 dot result).
    full_k_fp = (2 * (tm * Kp + tn * Kp) * cisz + 2 * tn * bisz
                 + 2 * tm * tn * oisz + tm * tn * 4)
    use_k_axis = force_k_tiled or (full_k_fp > vmem_budget_bytes)

    if use_k_axis:
        tk = _fit_tile(K, tk_max, 128)
        Kp = _round_up(K, tk)
        Kn = Kp // tk
        footprint = (2 * (tm * tk + tn * tk) * cisz + 2 * tn * bisz
                     + 2 * tm * tn * oisz + tm * tn * 4)
    else:
        tk = Kp
        Kn = 1
        footprint = full_k_fp

    vmem_limit = int(min(limit_cap, max(32 * 2**20, int(1.35 * footprint))))

    # ---- pad to tile multiples (zero-padding M/N/K is numerically exact) ----
    xp = x2 if (Mp, Kp) == (M, K) else jnp.pad(x2, ((0, Mp - M), (0, Kp - K)))
    wp = weight if (Np, Kp) == (N, K) else jnp.pad(weight, ((0, Np - N), (0, Kp - K)))
    if compute_dtype is not None:
        xp = xp.astype(cdt)
        wp = wp.astype(cdt)
    if pretranspose_w:
        wp = wp.T                                    # one-time (K, N) HBM pass
    bp = (bias if Np == N else jnp.pad(bias, (0, Np - N))).reshape(1, Np)

    if not use_k_axis:
        # Reuse-aware ordering: the operand whose index only depends on the
        # *outer* grid axis is read from HBM exactly once.
        #   order "ij": x once, weight re-read In times.
        #   order "ji": weight once, x re-read Jn times.
        order_ji = (Jn - 1) * Mp < (In - 1) * Np
        if pretranspose_w:
            w_block = (Kp, tn)
            w_idx_ij = lambda i, j: (0, j)
            w_idx_ji = lambda j, i: (0, j)
        else:
            w_block = (tn, Kp)
            w_idx_ij = lambda i, j: (j, 0)
            w_idx_ji = lambda j, i: (j, 0)

        if order_ji:
            grid = (Jn, In)
            in_specs = [
                pl.BlockSpec((tm, Kp), lambda j, i: (i, 0)),
                pl.BlockSpec(w_block, w_idx_ji),
                pl.BlockSpec((1, tn), lambda j, i: (0, j)),
            ]
            out_spec = pl.BlockSpec((tm, tn), lambda j, i: (i, j))
            stream_bytes = (Jn * Mp * Kp + Np * Kp) * cisz
        else:
            grid = (In, Jn)
            in_specs = [
                pl.BlockSpec((tm, Kp), lambda i, j: (i, 0)),
                pl.BlockSpec(w_block, w_idx_ij),
                pl.BlockSpec((1, tn), lambda i, j: (0, j)),
            ]
            out_spec = pl.BlockSpec((tm, tn), lambda i, j: (i, j))
            stream_bytes = (Mp * Kp + In * Np * Kp) * cisz
        stream_bytes += Mp * Np * oisz + max(In, Jn) * Np * bisz

        kernel = functools.partial(_full_k_kernel, dn=dn)
        grid_spec = pltpu.PrefetchScalarGridSpec(
            num_scalar_prefetch=0, grid=grid,
            in_specs=in_specs, out_specs=out_spec)
        dim_sem = ("parallel", "parallel")
    else:
        if pretranspose_w:
            w_block = (tk, tn)
            w_idx = lambda i, j, k: (k, j)
        else:
            w_block = (tn, tk)
            w_idx = lambda i, j, k: (j, k)
        in_specs = [
            pl.BlockSpec((tm, tk), lambda i, j, k: (i, k)),
            pl.BlockSpec(w_block, w_idx),
            pl.BlockSpec((1, tn), lambda i, j, k: (0, j)),
        ]
        out_spec = pl.BlockSpec((tm, tn), lambda i, j, k: (i, j))
        grid = (In, Jn, Kn)
        stream_bytes = ((Jn * Mp * Kp + In * Np * Kp) * cisz
                        + Mp * Np * oisz + In * Np * bisz)

        if jnp.dtype(out_dtype) == jnp.dtype(jnp.float32):
            kernel = functools.partial(_k_tiled_kernel_out_acc, dn=dn)
            scratch = ()
        else:
            kernel = functools.partial(_k_tiled_kernel_scratch, dn=dn)
            scratch = (pltpu.VMEM((tm, tn), jnp.float32),)
        grid_spec = pltpu.PrefetchScalarGridSpec(
            num_scalar_prefetch=0, grid=grid,
            in_specs=in_specs, out_specs=out_spec,
            scratch_shapes=scratch)
        dim_sem = ("parallel", "parallel", "arbitrary")

    cost = pl.CostEstimate(
        flops=2 * M * N * K,
        transcendentals=0,
        bytes_accessed=int(stream_bytes),
    )

    out = pl.pallas_call(
        kernel,
        out_shape=jax.ShapeDtypeStruct((Mp, Np), out_dtype),
        grid_spec=grid_spec,
        compiler_params=pltpu.CompilerParams(
            dimension_semantics=dim_sem,
            vmem_limit_bytes=vmem_limit,
        ),
        cost_estimate=cost,
    )(xp, wp, bp)

    out = out[:M, :N]
    return out.reshape(*orig_shape[:-1], N)


def init_meta_linear_params(key, in_features, out_features, dtype=jnp.float32):
    """Deterministic nn.Linear-style init: U(-1/sqrt(fan_in), 1/sqrt(fan_in))."""
    kw, kb = jax.random.split(key)
    bound = 1.0 / float(jnp.sqrt(jnp.float32(in_features)))
    weight = jax.random.uniform(
        kw, (out_features, in_features), jnp.float32, minval=-bound, maxval=bound
    ).astype(dtype)
    bias = jax.random.uniform(
        kb, (out_features,), jnp.float32, minval=-bound, maxval=bound
    ).astype(dtype)
    return weight, bias


# TODO(synk): MetaModule's named_params / update_params / set_param machinery is
# host-side Python parameter bookkeeping (meta-learning plumbing), not device
# compute — no Pallas equivalent needed; only the forward (F.linear) is a kernel.


if __name__ == "__main__":
    key = jax.random.PRNGKey(0)
    k1, k2, k3, k4, k5, k6, k7, k8 = jax.random.split(key, 8)

    # --- Test 1: small aligned shapes -> full-K path, pre-transposed weight ---
    x1 = jax.random.normal(k1, (8, 128), jnp.float32)
    w1, b1 = init_meta_linear_params(k2, 128, 128)
    y1 = meta_linear(x1, w1, b1)
    jax.block_until_ready(y1)
    ref1 = x1 @ w1.T + b1
    assert y1.shape == (8, 128)
    assert jnp.allclose(y1, ref1, atol=1e-5, rtol=1e-5), "mismatch (test 1)"

    # --- Test 2: ragged shapes, forced K-tiled, native (N,K) weight layout,
    #             f32 output -> direct output-block accumulation (no scratch) ---
    x2 = jax.random.normal(k3, (600, 272), jnp.float32)
    w2, b2 = init_meta_linear_params(k4, 272, 200)
    y2 = meta_linear(x2, w2, b2, tk_max=128, force_k_tiled=True)
    jax.block_until_ready(y2)
    ref2 = x2 @ w2.T + b2
    assert y2.shape == (600, 200)
    assert jnp.allclose(y2, ref2, atol=1e-4, rtol=1e-4), "mismatch (test 2)"

    # --- Test 3: bf16 inputs, forced K-tiled -> scratch-accumulator kernel,
    #             pre-transposed weight, parallel-axis split for 2-TC parts ---
    x3 = jax.random.normal(k5, (32, 320), jnp.float32).astype(jnp.bfloat16)
    w3, b3 = init_meta_linear_params(k6, 320, 192, dtype=jnp.bfloat16)
    y3 = meta_linear(x3, w3, b3, tk_max=128, force_k_tiled=True)
    jax.block_until_ready(y3)
    ref3 = (x3.astype(jnp.float32) @ w3.astype(jnp.float32).T
            + b3.astype(jnp.float32))
    assert y3.shape == (32, 192)
    assert jnp.allclose(y3.astype(jnp.float32), ref3, atol=2e-2, rtol=2e-2), \
        "mismatch (test 3)"

    # --- Test 4: optional bf16 compute path on f32 data (full-K) ---
    x4 = jax.random.normal(k7, (64, 256), jnp.float32)
    w4, b4 = init_meta_linear_params(k8, 256, 512)
    y4 = meta_linear(x4, w4, b4, compute_dtype=jnp.bfloat16)
    jax.block_until_ready(y4)
    ref4 = x4 @ w4.T + b4
    assert y4.shape == (64, 512)
    assert jnp.allclose(y4, ref4, atol=2e-2, rtol=2e-2), "mismatch (test 4)"

    print("KERNEL_OK")
</pallas_src>

<mosaic_0001>
module attributes {stable_mosaic.version = 11 : i64} {
  func.func @_full_k_kernel(%arg0: i32, %arg1: i32, %arg2: memref<8x128xf32, #tpu.memory_space<vmem>>, %arg3: memref<128x128xf32, #tpu.memory_space<vmem>>, %arg4: memref<1x128xf32, #tpu.memory_space<vmem>>, %arg5: memref<8x128xf32, #tpu.memory_space<vmem>>) attributes {dimension_semantics = [#tpu.dimension_semantics<parallel>, #tpu.dimension_semantics<parallel>], iteration_bounds = array<i64: 1, 1>, scalar_prefetch = 0 : i64, scratch_operands = 0 : i64, tpu.core_type = #tpu.core_type<tc>, window_params = [{transform_indices = @transform_0, window_bounds = array<i64: 8, 128>}, {transform_indices = @transform_1, window_bounds = array<i64: 128, 128>}, {transform_indices = @transform_2, window_bounds = array<i64: 1, 128>}, {transform_indices = @transform_3, window_bounds = array<i64: 8, 128>}]} {
    %c0 = arith.constant 0 : index
    %c0_0 = arith.constant 0 : index
    %0 = vector.load %arg2[%c0, %c0_0] : memref<8x128xf32, #tpu.memory_space<vmem>>, vector<8x128xf32>
    %c0_1 = arith.constant 0 : index
    %c0_2 = arith.constant 0 : index
    %1 = vector.load %arg3[%c0_1, %c0_2] : memref<128x128xf32, #tpu.memory_space<vmem>>, vector<128x128xf32>
    %cst = arith.constant dense<0.000000e+00> : vector<8x128xf32>
    %2 = tpu.matmul %0, %1, %cst {dimension_numbers = #tpu.dot_dimension_numbers<[1], [0], [0], [1], [0, 0, 1, 1], [], []>} : vector<8x128xf32>, vector<128x128xf32>, vector<8x128xf32> -> vector<8x128xf32>
    %c0_3 = arith.constant 0 : index
    %c0_4 = arith.constant 0 : index
    %3 = vector.load %arg4[%c0_3, %c0_4] : memref<1x128xf32, #tpu.memory_space<vmem>>, vector<1x128xf32>
    %4 = vector.broadcast %3 : vector<1x128xf32> to vector<8x128xf32>
    %5 = arith.addf %2, %4 : vector<8x128xf32>
    %c0_5 = arith.constant 0 : index
    %c0_6 = arith.constant 0 : index
    %6 = vector.load %arg5[%c0_5, %c0_6] : memref<8x128xf32, #tpu.memory_space<vmem>>, vector<8x128xf32>
    tpu.vector_store %arg5[%c0_5, %c0_6], %5 {strides = array<i32>} : memref<8x128xf32, #tpu.memory_space<vmem>>, vector<8x128xf32>,
    return
  }
  func.func @transform_0(%arg0: i32, %arg1: i32) -> (i32, i32) {
    %c0_i32 = arith.constant 0 : i32
    %c0_i32_0 = arith.constant 0 : i32
    return %arg0, %c0_i32 : i32, i32
  }
  func.func @transform_1(%arg0: i32, %arg1: i32) -> (i32, i32) {
    %c0_i32 = arith.constant 0 : i32
    %c0_i32_0 = arith.constant 0 : i32
    return %c0_i32, %arg1 : i32, i32
  }
  func.func @transform_2(%arg0: i32, %arg1: i32) -> (i32, i32) {
    %c0_i32 = arith.constant 0 : i32
    %c0_i32_0 = arith.constant 0 : i32
    return %c0_i32, %arg1 : i32, i32
  }
  func.func @transform_3(%arg0: i32, %arg1: i32) -> (i32, i32) {
    %c0_i32 = arith.constant 0 : i32
    return %arg0, %arg1 : i32, i32
  }
}

</mosaic_0001>

<llo_original>
// kernel: tpu_custom_call.1
$region0: #{tpu_custom_call.1}
  #allocation0 [shape = 'u32[]', space=smem, size = 0x4, offset = 0x4, fixed_abs, tag = 'smem constant byte address 0x4 - core index']
  #allocation1 [shape = 'u32[144,128]{1,0:T(1,128)}', space=vmem, size = 0x12000, scoped, tag = 'internal scratch']
  %s0 = inlined_call_operand.hbm [shape: f32[8,128], index: 0, kind: input, shape index: {}]
  %s1 = inlined_call_operand.hbm [shape: f32[128,128], index: 1, kind: input, shape index: {}]
  %s2 = inlined_call_operand.vmem [shape: f32[1,128], index: 2, kind: input, shape index: {}]
  %s3 = inlined_call_operand.hbm [shape: f32[8,128], index: 3, kind: output, shape index: {}]
  %s4 = sld [smem:[#allocation0]]
  $region30: #{tpu_custom_call.1} parent=0
    _
  %s6 = ssub.s32 1, %s4
  %s7 = scalar_select 0, %s6, %s4
  $region1: #{tpu_custom_call.1} parent=0
    #allocation2 [shape = 'u8[4096]{0}', space=vmem, size = 0x1000, scoped, tag = 'input window, operand 0, single buffered']
    #allocation3 [shape = 's32[1]{0}', space=sflag, size = 0x4, scoped, tag = 'scoped memory for tpu_custom_call.1']
    #allocation4 [shape = 's32[1]{0}', space=sflag, size = 0x4, scoped, tag = 'scoped memory for tpu_custom_call.1']
    #allocation5 [shape = 'u8[65536]{0}', space=vmem, size = 0x10000, scoped, tag = 'input window, operand 1, single buffered']
    #allocation6 [shape = 's32[1]{0}', space=sflag, size = 0x4, scoped, tag = 'scoped memory for tpu_custom_call.1']
    #allocation7 [shape = 'u8[4096]{0}', space=vmem, size = 0x1000, scoped, tag = 'output window, operand 0, single buffered']
    %8 = vsyncpa [#allocation3], 0
    %9 = vsyncpa [#allocation6], 0
    %10 = vsyncpa [#allocation4], 0
    // Predicated region
    $region2: #{tpu_custom_call.1} parent=1 // pred_check
      _
    $region3: #{tpu_custom_call.1} parent=1 // pred_check_branch
      %12 = sbr.rel (0) target = $region5
    $region4: #{tpu_custom_call.1} parent=1 // pred_region
      %s14 = ssub.s32 128, 128
      %15 = vsyncadd [#allocation3], %s14
      %s17 = sshll.u32 [#allocation2], 4
      %s18 = int_to_ptr.vmem [resolvable:$true] %s17
      %20 = dma.hbm_to_vmem [thread:$0]  %s0, 128, %s18, [#allocation3]
    $region5: #{tpu_custom_call.1} parent=1 // pred_fallthru
      _
    // Predicated region
    $region6: #{tpu_custom_call.1} parent=1 // pred_check
      _
    $region7: #{tpu_custom_call.1} parent=1 // pred_check_branch
      %22 = sbr.rel (0) target = $region9
    $region8: #{tpu_custom_call.1} parent=1 // pred_region
      %s24 = ssub.s32 2048, 2048
      %25 = vsyncadd [#allocation6], %s24
      %s26 = sshll.u32 [#allocation5], 4
      %s27 = int_to_ptr.vmem [resolvable:$true] %s26
      %32 = dma.hbm_to_vmem [thread:$0]  %s1, 2048, %s27, [#allocation6], 128, 128, 8
    $region9: #{tpu_custom_call.1} parent=1 // pred_fallthru
      _
    // Predicated region
    $region10: #{tpu_custom_call.1} parent=1 // pred_check
      _
    $region11: #{tpu_custom_call.1} parent=1 // pred_check_branch
      %34 = sbr.rel (0) target = $region13
    $region12: #{tpu_custom_call.1} parent=1 // pred_region
      _
    $region13: #{tpu_custom_call.1} parent=1 // pred_fallthru
      _
    // Predicated region
    $region14: #{tpu_custom_call.1} parent=1 // pred_check
      _
    $region15: #{tpu_custom_call.1} parent=1 // pred_check_branch
      %36 = sbr.rel (0) target = $region17
    $region16: #{tpu_custom_call.1} parent=1 // pred_region
      %37 = dma.done [#allocation3], 128
    $region17: #{tpu_custom_call.1} parent=1 // pred_fallthru
      _
    // Predicated region
    $region18: #{tpu_custom_call.1} parent=1 // pred_check
      _
    $region19: #{tpu_custom_call.1} parent=1 // pred_check_branch
      %39 = sbr.rel (0) target = $region21
    $region20: #{tpu_custom_call.1} parent=1 // pred_region
      %40 = dma.done [#allocation6], 2048
    $region21: #{tpu_custom_call.1} parent=1 // pred_fallthru
      _
    %v41 = vld [vmem:[#allocation2] sm:$0xff]
    %v42 = vld [vmem:[#allocation5] sm:$0xff]
    %v43 = vld [vmem:[#allocation5 + $0x8] sm:$0xff]
    %v44 = vld [vmem:[#allocation5 + $0x10] sm:$0xff]
    %v45 = vld [vmem:[#allocation5 + $0x18] sm:$0xff]
    %v46 = vld [vmem:[#allocation5 + $0x20] sm:$0xff]
    %v47 = vld [vmem:[#allocation5 + $0x28] sm:$0xff]
    %v48 = vld [vmem:[#allocation5 + $0x30] sm:$0xff]
    %v49 = vld [vmem:[#allocation5 + $0x38] sm:$0xff]
    %v50 = vld [vmem:[#allocation5 + $0x40] sm:$0xff]
    %v51 = vld [vmem:[#allocation5 + $0x48] sm:$0xff]
    %v52 = vld [vmem:[#allocation5 + $0x50] sm:$0xff]
    %v53 = vld [vmem:[#allocation5 + $0x58] sm:$0xff]
    %v54 = vld [vmem:[#allocation5 + $0x60] sm:$0xff]
    %v55 = vld [vmem:[#allocation5 + $0x68] sm:$0xff]
    %v56 = vld [vmem:[#allocation5 + $0x70] sm:$0xff]
    %v57 = vld [vmem:[#allocation5 + $0x78] sm:$0xff]
    %v58 = vld [vmem:[%s2] sm:$0x1]
    %v60 = vlaneseq
    %v61 = vshrl.u32 %v60, 7
    %v62 = vsub.s32 0, %v61
    %v63 = vrot.slane %v58, %v62
    %65 = vmatprep.subr.mxu0 0.0
    %66 = vmatpush1.msra.mxu0 %v42
    %67 = vmatprep.subr.mxu0 0.0
    %68 = vmatpush1.msra.mxu0 %v43
    %69 = vmatprep.subr.mxu0 0.0
    %70 = vmatpush1.msra.mxu0 %v44
    %71 = vmatprep.subr.mxu0 0.0
    %72 = vmatpush1.msra.mxu0 %v45
    %73 = vmatprep.subr.mxu0 0.0
    %74 = vmatpush1.msra.mxu0 %v46
    %75 = vmatprep.subr.mxu0 0.0
    %76 = vmatpush1.msra.mxu0 %v47
    %77 = vmatprep.subr.mxu0 0.0
    %78 = vmatpush1.msra.mxu0 %v48
    %79 = vmatprep.subr.mxu0 0.0
    %80 = vmatpush1.msra.mxu0 %v49
    %81 = vmatprep.subr.mxu0 0.0
    %82 = vmatpush1.msra.mxu0 %v50
    %83 = vmatprep.subr.mxu0 0.0
    %84 = vmatpush1.msra.mxu0 %v51
    %85 = vmatprep.subr.mxu0 0.0
    %86 = vmatpush1.msra.mxu0 %v52
    %87 = vmatprep.subr.mxu0 0.0
    %88 = vmatpush1.msra.mxu0 %v53
    %89 = vmatprep.subr.mxu0 0.0
    %90 = vmatpush1.msra.mxu0 %v54
    %91 = vmatprep.subr.mxu0 0.0
    %92 = vmatpush1.msra.mxu0 %v55
    %93 = vmatprep.subr.mxu0 0.0
    %94 = vmatpush1.msra.mxu0 %v56
    %95 = vmatprep.subr.mxu0 0.0
    %96 = vmatpush1.msra.mxu0 %v57
    %97 = vmatprep.subr.mxu0 0.0
    %98 = vmatpush1.msra.mxu0 0.0
    %99 = vmatprep.subr.mxu0 0.0
    %100 = vmatpush1.msra.mxu0 0.0
    %101 = vmatprep.subr.mxu0 0.0
    %102 = vmatpush1.msra.mxu0 0.0
    %103 = vmatprep.subr.mxu0 0.0
    %104 = vmatpush1.msra.mxu0 0.0
    %105 = vmatprep.subr.mxu0 0.0
    %106 = vmatpush1.msra.mxu0 0.0
    %107 = vmatprep.subr.mxu0 0.0
    %108 = vmatpush1.msra.mxu0 0.0
    %109 = vmatprep.subr.mxu0 0.0
    %110 = vmatpush1.msra.mxu0 0.0
    %111 = vmatprep.subr.mxu0 0.0
    %112 = vmatpush1.msra.mxu0 0.0
    %113 = vmatprep.subr.mxu0 0.0
    %114 = vmatpush1.msra.mxu0 0.0
    %115 = vmatprep.subr.mxu0 0.0
    %116 = vmatpush1.msra.mxu0 0.0
    %117 = vmatprep.subr.mxu0 0.0
    %118 = vmatpush1.msra.mxu0 0.0
    %119 = vmatprep.subr.mxu0 0.0
    %120 = vmatpush1.msra.mxu0 0.0
    %121 = vmatprep.subr.mxu0 0.0
    %122 = vmatpush1.msra.mxu0 0.0
    %123 = vmatprep.subr.mxu0 0.0
    %124 = vmatpush1.msra.mxu0 0.0
    %125 = vmatprep.subr.mxu0 0.0
    %126 = vmatpush1.msra.mxu0 0.0
    %127 = vmatprep.subr.mxu0 0.0
    %128 = vmatpush1.msra.mxu0 0.0
    %129 = vmatprep.mubr.f32.mxu0 0.0
    %130 = vmatmul.mubr.f32.gmra.mrb[0].mxu0 %v41
    %v131 = vpop.f32.mrb[0].mxu0
    %v132 = vadd.f32 %v63, %v131
    %v133 = vpop.f32.mrb[0].mxu0
    %134 = vdwg.mxu0
    %135 = vst [vmem:[#allocation7] sm:$0xff] %v132
    // Predicated region
    $region22: #{tpu_custom_call.1} parent=1 // pred_check
      _
    $region23: #{tpu_custom_call.1} parent=1 // pred_check_branch
      %137 = sbr.rel (0) target = $region25
    $region24: #{tpu_custom_call.1} parent=1 // pred_region
      %s139 = ssub.s32 128, 128
      %140 = vsyncadd [#allocation4], %s139
      %s142 = sshll.u32 [#allocation7], 4
      %s143 = int_to_ptr.vmem [resolvable:$true] %s142
      %145 = dma.vmem_to_hbm [thread:$0]  %s143, 128, %s3, [#allocation4]
    $region25: #{tpu_custom_call.1} parent=1 // pred_fallthru
      _
    // Predicated region
    $region26: #{tpu_custom_call.1} parent=1 // pred_check
      _
    $region27: #{tpu_custom_call.1} parent=1 // pred_check_branch
      %147 = sbr.rel (0) target = $region29
    $region28: #{tpu_custom_call.1} parent=1 // pred_region
      %148 = dma.done [#allocation4], 128
    $region29: #{tpu_custom_call.1} parent=1 // pred_fallthru
      _
    %149 = vsyncpa [#allocation3], 1
    %150 = vsyncpa [#allocation6], 1
    %151 = vsyncpa [#allocation4], 1

</llo_original>
